<compile_context>
chip_gen: v6e
topology: v6e:2x2x1
jax: 0.10.0
libtpu: 0.0.40
codegen_flags: <defaults>
</compile_context>

<pallas_src>
import functools

import jax
import jax.numpy as jnp
from jax import lax
from jax.experimental import pallas as pl
from jax.experimental.pallas import tpu as pltpu

_LANE = 128
_SUBLANE = 8


def _round_up(x: int, m: int) -> int:
    return ((x + m - 1) // m) * m


def _vmem_capacity_bytes() -> int:
    """Physical VMEM per TensorCore; falls back to the smallest (v7x) budget."""
    try:
        cap = int(pltpu.get_tpu_info().vmem_capacity_bytes)
        if (16 << 20) <= cap <= (256 << 20):
            return cap
    except Exception:
        pass
    return 64 << 20


# -----------------------------------------------------------------------------
# Parameter initialization (glue, plain JAX): Xavier-uniform centers followed
# by the module's Gram-Schmidt orthogonalization (orthogonal=True). One-time
# setup, intentionally not a kernel.
# -----------------------------------------------------------------------------
def init_cluster_centers(key, cluster_number: int, embedding_dimension: int):
    bound = (6.0 / (cluster_number + embedding_dimension)) ** 0.5
    init = jax.random.uniform(
        key, (cluster_number, embedding_dimension),
        minval=-bound, maxval=bound, dtype=jnp.float32)

    # Replicate the PyTorch loop exactly (including the in-place update of
    # `initial_cluster_centers[i]` before normalization, and row 0 being
    # copied unnormalized).
    work = [init[i] for i in range(cluster_number)]
    ortho = [None] * cluster_number
    ortho[0] = work[0]
    for i in range(1, cluster_number):
        project = jnp.zeros((embedding_dimension,), jnp.float32)
        for j in range(i):
            u = work[j]
            v = work[i]
            project = project + (jnp.dot(u, v) / jnp.dot(u, u)) * u
        work[i] = work[i] - project
        ortho[i] = work[i] / jnp.linalg.norm(work[i])
    return jnp.stack(ortho, axis=0)


# -----------------------------------------------------------------------------
# Pallas kernel: per batch-tile
#   scores = (batch_tile @ scaled_centers)^2    (norm folded into the centers)
#   out    = softmax(scores over valid clusters), exact normalization
# -----------------------------------------------------------------------------
def cluster_assignment_kernel(batch_ref, centers_ref, out_ref, *, num_valid_k):
    # Stream the tile in its native dtype; cast on the VPU (ample slack).
    b = batch_ref[...].astype(jnp.float32)       # [TB, E]
    c = centers_ref[...]                         # [E, Kp] f32, norm pre-folded

    # Canonical (1,)x(0,) contraction against the stationary, lane-dense
    # centers operand.
    scores = jnp.dot(b, c, preferred_element_type=jnp.float32)   # [TB, Kp]
    scores = scores * scores                     # (b.c)^2 / ||c||

    kp = scores.shape[1]
    if num_valid_k < kp:
        # [1, Kp] iota broadcast instead of a full [TB, Kp] iota.
        col = lax.broadcasted_iota(jnp.int32, (1, kp), 1)
        scores = jnp.where(col < num_valid_k, scores, -jnp.inf)

    # Numerically stable softmax; EXACT normalization so rows sum to 1.
    m = jnp.max(scores, axis=-1, keepdims=True)
    e = jnp.exp(scores - m)
    denom = jnp.sum(e, axis=-1, keepdims=True)
    out_ref[...] = e / denom


def cluster_assignment(batch: jax.Array,
                       cluster_centers: jax.Array,
                       *,
                       block_b: int | None = None,
                       vmem_limit_bytes: int | None = None) -> jax.Array:
    """batch: [B, E], cluster_centers: [K, E] -> soft assignments [B, K] f32."""
    B, E = batch.shape
    K, E2 = cluster_centers.shape
    assert E == E2

    centers = cluster_centers.astype(jnp.float32)

    # Fold the per-cluster L2 norm into the centers once (reused by all tiles):
    #   (b . c * ||c||^(-1/2))^2 = (b . c)^2 / ||c||
    # The 1e-12 floor guards degenerate zero-norm rows (torch would emit nan).
    norm = jnp.sqrt(jnp.sum(centers * centers, axis=-1, keepdims=True))
    norm = jnp.maximum(norm, jnp.float32(1e-12))
    centers_scaled = centers * lax.rsqrt(norm)

    # Pad clusters to a lane-dense multiple of 128 and pre-transpose once to
    # the stationary MXU weight layout [E, Kp].
    Kp = _round_up(max(K, 1), _LANE)
    centers_t = jnp.pad(centers_scaled, ((0, Kp - K), (0, 0))).T   # [E, Kp]

    # ---- adaptive batch tile -------------------------------------------------
    batch_itemsize = jnp.dtype(batch.dtype).itemsize
    cap = _vmem_capacity_bytes()
    budget = int(cap * 0.70)                       # headroom for compiler scratch
    # double-buffered batch-in + out tiles, double-buffered (constant) centers
    bytes_per_row = 2 * E * batch_itemsize + 2 * Kp * 4
    fixed_bytes = 2 * Kp * E * 4
    tb_fit = max(_SUBLANE, (budget - fixed_bytes) // bytes_per_row)
    tb_fit = max(_SUBLANE, (tb_fit // _SUBLANE) * _SUBLANE)

    target = block_b if block_b is not None else 2048
    # >= 2 tiles when B is large so the "parallel" axis can use both v7x cores.
    two_tile_cap = _round_up(pl.cdiv(max(B, 1), 2), _SUBLANE)
    TB = max(_SUBLANE, min(target, tb_fit, two_tile_cap))

    n_tiles = pl.cdiv(B, TB)
    Bp = n_tiles * TB
    batch_p = jnp.pad(batch, ((0, Bp - B), (0, 0)))

    if vmem_limit_bytes is None:
        need = fixed_bytes + TB * bytes_per_row + (4 << 20)
        vmem_limit_bytes = int(min(cap, max(need, 32 << 20)))

    kernel = functools.partial(cluster_assignment_kernel, num_valid_k=K)

    cost = pl.CostEstimate(
        flops=2 * Bp * E * Kp,
        transcendentals=Bp * Kp,
        bytes_accessed=Bp * E * batch_itemsize + Bp * Kp * 4 + Kp * E * 4,
    )

    out = pl.pallas_call(
        kernel,
        out_shape=jax.ShapeDtypeStruct((Bp, Kp), jnp.float32),
        grid=(n_tiles,),
        in_specs=[
            pl.BlockSpec((TB, E), lambda i: (i, 0)),    # streamed batch tiles
            pl.BlockSpec((E, Kp), lambda i: (0, 0)),    # stationary centers
        ],
        out_specs=pl.BlockSpec((TB, Kp), lambda i: (i, 0)),
        compiler_params=pltpu.CompilerParams(
            dimension_semantics=("parallel",),
            vmem_limit_bytes=vmem_limit_bytes),
        cost_estimate=cost,
    )(batch_p, centers_t)

    # NOTE: the slice re-reads the padded output once; an unpadded-output
    # variant trades that against masked (<128-lane) stores and must be
    # benchmarked before switching (perf-review item).
    return out[:B, :K]


# Pure-JAX reference (matches the PyTorch forward, project_assignment=True).
def cluster_assignment_ref(batch, centers):
    batch = batch.astype(jnp.float32)
    centers = centers.astype(jnp.float32)
    assignment = batch @ centers.T
    assignment = assignment ** 2
    norm = jnp.linalg.norm(centers, axis=-1)
    soft = assignment / norm
    return jax.nn.softmax(soft, axis=-1)


if __name__ == "__main__":
    key = jax.random.PRNGKey(0)
    k_centers, k_batch, k_batch2 = jax.random.split(key, 3)

    # Small shapes consistent with the module.
    cluster_number = 4
    embedding_dimension = 32
    batch_size = 8

    centers = init_cluster_centers(k_centers, cluster_number, embedding_dimension)
    batch = jax.random.normal(
        k_batch, (batch_size, embedding_dimension), dtype=jnp.float32)

    out = jax.block_until_ready(cluster_assignment(batch, centers))
    ref = cluster_assignment_ref(batch, centers)
    assert out.shape == (batch_size, cluster_number)
    assert jnp.allclose(out, ref, atol=2e-3, rtol=2e-3)
    # Exact softmax divide -> rows sum to 1 to f32 roundoff.
    assert jnp.allclose(jnp.sum(out, axis=-1), 1.0, atol=2e-3)

    # Second check: multi-tile grid, batch padding and cluster padding together.
    B2, E2, K2 = 1000, 256, 12
    centers2 = jax.random.normal(k_centers, (K2, E2), dtype=jnp.float32)
    batch2 = jax.random.normal(k_batch2, (B2, E2), dtype=jnp.float32)
    out2 = jax.block_until_ready(
        cluster_assignment(batch2, centers2, block_b=256))
    ref2 = cluster_assignment_ref(batch2, centers2)
    assert out2.shape == (B2, K2)
    assert jnp.allclose(out2, ref2, atol=2e-3, rtol=2e-3)
    assert jnp.allclose(jnp.sum(out2, axis=-1), 1.0, atol=2e-3)

    # Third check: native-dtype streaming path (no wrapper f32 upcast).
    out3 = jax.block_until_ready(
        cluster_assignment(batch2.astype(jnp.bfloat16), centers2))
    assert out3.shape == (B2, K2)
    assert bool(jnp.all(jnp.isfinite(out3)))
    assert jnp.allclose(jnp.sum(out3, axis=-1), 1.0, atol=2e-3)

    # TODO(synk): project_assignment=False branch (Student-t soft assignment)
    # is not exercised by the default config and is not implemented here.
    print("KERNEL_OK")
</pallas_src>

<mosaic_0001>
module attributes {stable_mosaic.version = 11 : i64} {
  func.func @cluster_assignment_kernel(%arg0: i32, %arg1: memref<8x32xf32, #tpu.memory_space<vmem>>, %arg2: memref<32x128xf32, #tpu.memory_space<vmem>>, %arg3: memref<8x128xf32, #tpu.memory_space<vmem>>) attributes {dimension_semantics = [#tpu.dimension_semantics<parallel>], iteration_bounds = array<i64: 1>, scalar_prefetch = 0 : i64, scratch_operands = 0 : i64, tpu.core_type = #tpu.core_type<tc>, window_params = [{transform_indices = @transform_0, window_bounds = array<i64: 8, 32>}, {pipeline_mode = #tpu.pipeline_mode<synchronous>, transform_indices = @transform_1, window_bounds = array<i64: 32, 128>}, {transform_indices = @transform_2, window_bounds = array<i64: 8, 128>}]} {
    %c0 = arith.constant 0 : index
    %c0_0 = arith.constant 0 : index
    %0 = vector.load %arg1[%c0, %c0_0] : memref<8x32xf32, #tpu.memory_space<vmem>>, vector<8x32xf32>
    %c0_1 = arith.constant 0 : index
    %c0_2 = arith.constant 0 : index
    %1 = vector.load %arg2[%c0_1, %c0_2] : memref<32x128xf32, #tpu.memory_space<vmem>>, vector<32x128xf32>
    %cst = arith.constant dense<0.000000e+00> : vector<8x128xf32>
    %2 = tpu.matmul %0, %1, %cst {dimension_numbers = #tpu.dot_dimension_numbers<[1], [0], [0], [1], [0, 0, 1, 1], [], []>} : vector<8x32xf32>, vector<32x128xf32>, vector<8x128xf32> -> vector<8x128xf32>
    %3 = arith.mulf %2, %2 : vector<8x128xf32>
    %4 = tpu.iota {dimensions = array<i32: 1>} : vector<1x128xi32>
    %c4_i32 = arith.constant 4 : i32
    %5 = vector.broadcast %c4_i32 : i32 to vector<1x128xi32>
    %6 = arith.cmpi slt, %4, %5 : vector<1x128xi32>
    %cst_3 = arith.constant 0xFF800000 : f32
    %7 = vector.shape_cast %6 : vector<1x128xi1> to vector<1x128xi1>
    %8 = vector.broadcast %7 : vector<1x128xi1> to vector<8x128xi1>
    %9 = vector.broadcast %cst_3 : f32 to vector<8x128xf32>
    %10 = arith.select %8, %3, %9 : vector<8x128xi1>, vector<8x128xf32>
    %cst_4 = arith.constant dense<0xFF800000> : vector<8xf32>
    %11 = vector.multi_reduction <maximumf>, %10, %cst_4 [1] : vector<8x128xf32> to vector<8xf32>
    %12 = vector.shape_cast %11 : vector<8xf32> to vector<8x1xf32>
    %13 = vector.broadcast %12 : vector<8x1xf32> to vector<8x128xf32>
    %14 = arith.subf %10, %13 : vector<8x128xf32>
    %15 = math.exp %14 : vector<8x128xf32>
    %cst_5 = arith.constant dense<0.000000e+00> : vector<8xf32>
    %16 = vector.multi_reduction <add>, %15, %cst_5 [1] : vector<8x128xf32> to vector<8xf32>
    %17 = vector.shape_cast %16 : vector<8xf32> to vector<8x1xf32>
    %18 = vector.broadcast %17 : vector<8x1xf32> to vector<8x128xf32>
    %19 = arith.divf %15, %18 : vector<8x128xf32>
    %c0_6 = arith.constant 0 : index
    %c0_7 = arith.constant 0 : index
    %20 = vector.load %arg3[%c0_6, %c0_7] : memref<8x128xf32, #tpu.memory_space<vmem>>, vector<8x128xf32>
    tpu.vector_store %arg3[%c0_6, %c0_7], %19 {strides = array<i32>} : memref<8x128xf32, #tpu.memory_space<vmem>>, vector<8x128xf32>,
    return
  }
  func.func @transform_0(%arg0: i32) -> (i32, i32) {
    %c0_i32 = arith.constant 0 : i32
    %c0_i32_0 = arith.constant 0 : i32
    return %arg0, %c0_i32 : i32, i32
  }
  func.func @transform_1(%arg0: i32) -> (i32, i32) {
    %c0_i32 = arith.constant 0 : i32
    %c0_i32_0 = arith.constant 0 : i32
    %c0_i32_1 = arith.constant 0 : i32
    return %c0_i32, %c0_i32_0 : i32, i32
  }
  func.func @transform_2(%arg0: i32) -> (i32, i32) {
    %c0_i32 = arith.constant 0 : i32
    %c0_i32_0 = arith.constant 0 : i32
    return %arg0, %c0_i32 : i32, i32
  }
}

</mosaic_0001>

<llo_original>
// kernel: tpu_custom_call.1
$region0: #{tpu_custom_call.1}
  #allocation0 [shape = 'u32[]', space=smem, size = 0x4, offset = 0x4, fixed_abs, tag = 'smem constant byte address 0x4 - core index']
  #allocation1 [shape = 'u32[144,128]{1,0:T(1,128)}', space=vmem, size = 0x12000, scoped, tag = 'internal scratch']
  %s0 = inlined_call_operand.hbm [shape: f32[8,32], index: 0, kind: input, shape index: {}]
  %s1 = inlined_call_operand.hbm [shape: f32[32,128], index: 1, kind: input, shape index: {}]
  %s2 = inlined_call_operand.hbm [shape: f32[8,128], index: 2, kind: output, shape index: {}]
  %s3 = sld [smem:[#allocation0]]
  $region26: #{tpu_custom_call.1} parent=0
    _
  %s5 = ssub.s32 1, %s3
  %s6 = scalar_select 0, %s5, %s3
  $region1: #{tpu_custom_call.1} parent=0
    #allocation2 [shape = 'u8[4096]{0}', space=vmem, size = 0x1000, scoped, tag = 'input window, operand 0, single buffered']
    #allocation3 [shape = 's32[1]{0}', space=sflag, size = 0x4, scoped, tag = 'scoped memory for tpu_custom_call.1']
    #allocation4 [shape = 's32[1]{0}', space=sflag, size = 0x4, scoped, tag = 'scoped memory for tpu_custom_call.1']
    #allocation5 [shape = 'u8[16384]{0}', space=vmem, size = 0x4000, scoped, tag = 'input window, operand 1, single buffered']
    #allocation6 [shape = 's32[1]{0}', space=sflag, size = 0x4, scoped, tag = 'scoped memory for tpu_custom_call.1']
    #allocation7 [shape = 'u8[4096]{0}', space=vmem, size = 0x1000, scoped, tag = 'output window, operand 0, single buffered']
    %7 = vsyncpa [#allocation3], 0
    %8 = vsyncpa [#allocation6], 0
    %9 = vsyncpa [#allocation4], 0
    // Predicated region
    $region2: #{tpu_custom_call.1} parent=1 // pred_check
      _
    $region3: #{tpu_custom_call.1} parent=1 // pred_check_branch
      %11 = sbr.rel (0) target = $region5
    $region4: #{tpu_custom_call.1} parent=1 // pred_region
      %s13 = ssub.s32 128, 128
      %14 = vsyncadd [#allocation3], %s13
      %s16 = sshll.u32 [#allocation2], 4
      %s17 = int_to_ptr.vmem [resolvable:$true] %s16
      %19 = dma.hbm_to_vmem [thread:$0]  %s0, 128, %s17, [#allocation3]
    $region5: #{tpu_custom_call.1} parent=1 // pred_fallthru
      _
    // Predicated region
    $region6: #{tpu_custom_call.1} parent=1 // pred_check
      _
    $region7: #{tpu_custom_call.1} parent=1 // pred_check_branch
      %21 = sbr.rel (0) target = $region9
    $region8: #{tpu_custom_call.1} parent=1 // pred_region
      %s23 = ssub.s32 512, 512
      %24 = vsyncadd [#allocation6], %s23
      %s25 = sshll.u32 [#allocation5], 4
      %s26 = int_to_ptr.vmem [resolvable:$true] %s25
      %31 = dma.hbm_to_vmem [thread:$0]  %s1, 512, %s26, [#allocation6], 128, 128, 8
    $region9: #{tpu_custom_call.1} parent=1 // pred_fallthru
      _
    // Predicated region
    $region10: #{tpu_custom_call.1} parent=1 // pred_check
      _
    $region11: #{tpu_custom_call.1} parent=1 // pred_check_branch
      %33 = sbr.rel (0) target = $region13
    $region12: #{tpu_custom_call.1} parent=1 // pred_region
      %34 = dma.done [#allocation3], 128
    $region13: #{tpu_custom_call.1} parent=1 // pred_fallthru
      _
    // Predicated region
    $region14: #{tpu_custom_call.1} parent=1 // pred_check
      _
    $region15: #{tpu_custom_call.1} parent=1 // pred_check_branch
      %36 = sbr.rel (0) target = $region17
    $region16: #{tpu_custom_call.1} parent=1 // pred_region
      %37 = dma.done [#allocation6], 512
    $region17: #{tpu_custom_call.1} parent=1 // pred_fallthru
      _
    %v38 = vld [vmem:[#allocation2] sm:$0xff]
    %v39 = vld [vmem:[#allocation5] sm:$0xff]
    %v40 = vld [vmem:[#allocation5 + $0x8] sm:$0xff]
    %v41 = vld [vmem:[#allocation5 + $0x10] sm:$0xff]
    %v42 = vld [vmem:[#allocation5 + $0x18] sm:$0xff]
    %vm43 = vcmask 261120
    %v45 = vsel %vm43, %v38, 0
    %47 = vmatprep.subr.mxu0 0.0
    %48 = vmatpush1.msra.mxu0 0.0
    %49 = vmatprep.subr.mxu0 0.0
    %50 = vmatpush1.msra.mxu0 0.0
    %51 = vmatprep.subr.mxu0 0.0
    %52 = vmatpush1.msra.mxu0 0.0
    %53 = vmatprep.subr.mxu0 0.0
    %54 = vmatpush1.msra.mxu0 0.0
    %55 = vmatprep.subr.mxu0 0.0
    %56 = vmatpush1.msra.mxu0 0.0
    %57 = vmatprep.subr.mxu0 0.0
    %58 = vmatpush1.msra.mxu0 0.0
    %59 = vmatprep.subr.mxu0 0.0
    %60 = vmatpush1.msra.mxu0 0.0
    %61 = vmatprep.subr.mxu0 0.0
    %62 = vmatpush1.msra.mxu0 0.0
    %63 = vmatprep.subr.mxu0 0.0
    %64 = vmatpush1.msra.mxu0 0.0
    %65 = vmatprep.subr.mxu0 0.0
    %66 = vmatpush1.msra.mxu0 0.0
    %67 = vmatprep.subr.mxu0 0.0
    %68 = vmatpush1.msra.mxu0 0.0
    %69 = vmatprep.subr.mxu0 0.0
    %70 = vmatpush1.msra.mxu0 0.0
    %71 = vmatprep.subr.mxu0 0.0
    %72 = vmatpush1.msra.mxu0 %v42
    %73 = vmatprep.subr.mxu0 0.0
    %74 = vmatpush1.msra.mxu0 %v41
    %75 = vmatprep.subr.mxu0 0.0
    %76 = vmatpush1.msra.mxu0 %v40
    %77 = vmatprep.subr.mxu0 0.0
    %78 = vmatpush1.msra.mxu0 %v39
    %79 = vmatprep.subr.mxu0 0.0
    %80 = vmatpush2.msra.mxu0 0.0
    %81 = vmatprep.subr.mxu0 0.0
    %82 = vmatpush2.msra.mxu0 0.0
    %83 = vmatprep.subr.mxu0 0.0
    %84 = vmatpush2.msra.mxu0 0.0
    %85 = vmatprep.subr.mxu0 0.0
    %86 = vmatpush2.msra.mxu0 0.0
    %87 = vmatprep.subr.mxu0 0.0
    %88 = vmatpush2.msra.mxu0 0.0
    %89 = vmatprep.subr.mxu0 0.0
    %90 = vmatpush2.msra.mxu0 0.0
    %91 = vmatprep.subr.mxu0 0.0
    %92 = vmatpush2.msra.mxu0 0.0
    %93 = vmatprep.subr.mxu0 0.0
    %94 = vmatpush2.msra.mxu0 0.0
    %95 = vmatprep.subr.mxu0 0.0
    %96 = vmatpush2.msra.mxu0 0.0
    %97 = vmatprep.subr.mxu0 0.0
    %98 = vmatpush2.msra.mxu0 0.0
    %99 = vmatprep.subr.mxu0 0.0
    %100 = vmatpush2.msra.mxu0 0.0
    %101 = vmatprep.subr.mxu0 0.0
    %102 = vmatpush2.msra.mxu0 0.0
    %103 = vmatprep.subr.mxu0 0.0
    %104 = vmatpush2.msra.mxu0 0.0
    %105 = vmatprep.subr.mxu0 0.0
    %106 = vmatpush2.msra.mxu0 0.0
    %107 = vmatprep.subr.mxu0 0.0
    %108 = vmatpush2.msra.mxu0 0.0
    %109 = vmatprep.subr.mxu0 0.0
    %110 = vmatpush2.msra.mxu0 0.0
    %111 = vmatprep.mubr.f32.mxu0 0.0
    %112 = vmatmul.mubr.f32.gmra.mxu0 %v45
    %v113 = vpop.f32.mrf.mxu0
    %v114 = vadd.f32 0.0, %v113
    %v115 = vpop.f32.mrf.mxu0
    %116 = vdwg.mxu0
    %v117 = vmul.f32 %v114, %v114
    %v118 = vlaneseq
    %v119 = vand.u32 %v118, 127
    %vm120 = vcmp.lt.s32.totalorder %v119, 4
    %v121 = vsel %vm120, 1, 0
    %vm122 = vcmp.eq.s32.totalorder %v121, 1
    %v123 = vsel %vm122, %v117, -inf
    %124 = vmax.xlane.f32.xlu0 %v123
    %v125 = vpop.xlane.xlu0 %124
    %v126 = vsub.f32 %v123, %v125
    %v127 = vmul.f32 %v126, 1.442695
    %v128 = vpow.pop %v127
    %129 = vadd.xlane.f32.xlu0 %v128
    %v130 = vpop.xlane.xlu0 %129
    %v131 = vrcp.pop %v130
    %v132 = vmul.f32 %v128, %v131
    %133 = vst [vmem:[#allocation7] sm:$0xff] %v132
    // Predicated region
    $region18: #{tpu_custom_call.1} parent=1 // pred_check
      _
    $region19: #{tpu_custom_call.1} parent=1 // pred_check_branch
      %135 = sbr.rel (0) target = $region21
    $region20: #{tpu_custom_call.1} parent=1 // pred_region
      %s137 = ssub.s32 128, 128
      %138 = vsyncadd [#allocation4], %s137
      %s140 = sshll.u32 [#allocation7], 4
      %s141 = int_to_ptr.vmem [resolvable:$true] %s140
      %143 = dma.vmem_to_hbm [thread:$0]  %s141, 128, %s2, [#allocation4]
    $region21: #{tpu_custom_call.1} parent=1 // pred_fallthru
      _
    // Predicated region
    $region22: #{tpu_custom_call.1} parent=1 // pred_check
      _
    $region23: #{tpu_custom_call.1} parent=1 // pred_check_branch
      %145 = sbr.rel (0) target = $region25
    $region24: #{tpu_custom_call.1} parent=1 // pred_region
      %146 = dma.done [#allocation4], 128
    $region25: #{tpu_custom_call.1} parent=1 // pred_fallthru
      _
    %147 = vsyncpa [#allocation3], 1
    %148 = vsyncpa [#allocation6], 1
    %149 = vsyncpa [#allocation4], 1

</llo_original>
